<compile_context>
chip_gen: v7x
topology: tpu7x:2x2x1
jax: 0.10.0
libtpu: 0.0.40
codegen_flags: <defaults>
</compile_context>

<pallas_src>
import functools
import math

import jax
import jax.numpy as jnp
from jax.experimental import pallas as pl
from jax.experimental.pallas import tpu as pltpu

EPS = 1e-07
LOG_EPS = math.log(EPS)


def _gce_kernel(pred_ref, lab_ref, out_ref, *, q, inv_q, num_classes, total_n):
    """One grid step: a (T, C_pad) block of native-layout logits, T samples."""
    i = pl.program_id(0)

    # Fold the transpose into the kernel (XLU slot, overlaps with EUP/VPU):
    # the block's class axis is already lane-padded to a multiple of 128, so
    # this is a fully aligned f32 transpose; drop the pad rows afterwards.
    xf = pred_ref[...].astype(jnp.float32)                       # (T, C_pad)
    xt = jnp.transpose(xf)                                       # (C_pad, T)
    x = xt[:num_classes, :]                                      # (C, T) dense
    lab = lab_ref[...]                                           # (1, T) int32
    c, t = x.shape

    # Numerically-stable softmax statistics along the class (sublane) axis.
    m = jnp.max(x, axis=0, keepdims=True)                        # (1, T)
    e = jnp.exp(x - m)                                           # (C, T) dense
    denom = jnp.sum(e, axis=0, keepdims=True)                    # (1, T)

    # One-hot gather of the true-class logit via a broadcast compare.
    cls = jax.lax.broadcasted_iota(jnp.int32, (c, t), 0)
    x_true = jnp.sum(jnp.where(cls == lab, x, 0.0),
                     axis=0, keepdims=True)                      # (1, T)

    # Log-domain GCE:  p = clip(softmax_true, EPS, 1) = exp(clip(log_p, logEPS, 0))
    # loss = (1 - p**q) / q   -- no reciprocal / Newton step needed.
    log_p = jnp.clip((x_true - m) - jnp.log(denom), LOG_EPS, 0.0)
    loss = (1.0 - jnp.exp(q * log_p)) * inv_q                    # (1, T)

    last = pl.num_programs(0) - 1

    @pl.when(i < last)
    def _():
        # Common path: unmasked, lane-dense store.
        out_ref[...] = loss

    @pl.when(i == last)
    def _():
        # Only the last block can be partial: zero lanes past N so garbage
        # (possibly NaN/Inf) rows never reach the final sum.
        col = i * t + jax.lax.broadcasted_iota(jnp.int32, (1, t), 1)
        out_ref[...] = jnp.where(col < total_n, loss, 0.0)


def _pick_tile(n, c, itemsize, tile_n, vmem_budget_bytes):
    """Largest 128-multiple sample tile whose block + temporaries fit VMEM."""
    c_lane = pl.cdiv(c, 128) * 128      # lane-padded class axis (physical VMEM)
    c_sub = pl.cdiv(c, 8) * 8           # sublane-padded class axis (dense temps)
    per_sample = (2 * c_lane * itemsize     # double-buffered (T, C_pad) input block
                  + 2 * c_lane * 4          # f32 copy + aligned-transpose intermediate
                  + 5 * c_sub * 4           # dense (C, T) temporaries (x, e, iota, select, slack)
                  + 4 * 8 * 4)              # label + loss rows (8-sublane padded), 2 buffers each
    max_tile = max(128, (vmem_budget_bytes // per_sample) // 128 * 128)
    tile = max(128, (min(int(tile_n), max_tile) // 128) * 128)
    # Never make the block much larger than the array itself.
    tile = min(tile, max(128, pl.cdiv(n, 128) * 128))
    if n > 128:
        # v7x megacore: keep >= 2 grid blocks so both TensorCores get work
        # (no effect on v5e/v6e, which have a single TC).
        tile = min(tile, max(128, (pl.cdiv(n, 2) // 128) * 128))
    return tile


def gce_loss(pred, labels, *, q=0.7, tile_n=8192,
             vmem_budget_bytes=24 * 1024 * 1024):
    """pred: (N, C) float (any dtype); labels: (N,) int. Scalar mean GCE loss."""
    n, c = pred.shape
    q = float(q)

    # No wrapper-side transpose or up-cast: pred goes to the kernel as-is.
    lab = labels.astype(jnp.int32).reshape(1, n)

    tile = _pick_tile(n, c, pred.dtype.itemsize, tile_n, vmem_budget_bytes)
    n_blocks = pl.cdiv(n, tile)
    c_pad = pl.cdiv(c, 128) * 128       # lane-padded class axis for the block

    kernel = functools.partial(_gce_kernel, q=q, inv_q=1.0 / q,
                               num_classes=c, total_n=n)

    losses = pl.pallas_call(
        kernel,
        # Padded, lane-dense per-sample loss row; lanes past N are exactly 0.
        out_shape=jax.ShapeDtypeStruct((1, n_blocks * tile), jnp.float32),
        grid_spec=pltpu.PrefetchScalarGridSpec(
            num_scalar_prefetch=0,
            grid=(n_blocks,),
            in_specs=[
                # Native (N, C) logits; class axis lane-padded via the block
                # shape (single block along that axis, boundary is padded).
                pl.BlockSpec((tile, c_pad), lambda i: (i, 0)),
                pl.BlockSpec((1, tile), lambda i: (0, i)),       # labels
            ],
            out_specs=pl.BlockSpec((1, tile), lambda i: (0, i)),
        ),
        compiler_params=pltpu.CompilerParams(
            # No carried accumulator -> embarrassingly parallel grid axis.
            dimension_semantics=("parallel",),
            # Explicit scoped-VMEM limit: >= budget + headroom, within every
            # generation's limits (v5e default 16MiB scoped, v7x 64MiB phys).
            vmem_limit_bytes=32 * 1024 * 1024,
        ),
    )(pred, lab)

    # Final mean in plain JAX: padded lanes are already 0, one multiply by 1/N.
    return jnp.sum(losses) * jnp.float32(1.0 / n)


def gce_loss_ref(pred, labels, *, q=0.7):
    """Pure-JAX reference mirroring the PyTorch forward."""
    p = jax.nn.softmax(pred.astype(jnp.float32), axis=1)
    p = jnp.clip(p, EPS, 1.0)
    onehot = jax.nn.one_hot(labels.astype(jnp.int32), pred.shape[1],
                            dtype=jnp.float32)
    loss = (1.0 - jnp.power(jnp.sum(onehot * p, axis=1), q)) / q
    return jnp.mean(loss)


if __name__ == "__main__":
    key = jax.random.PRNGKey(0)
    k1, k2, k3, k4, k5, k6 = jax.random.split(key, 6)

    num_classes = 10

    # 1) Small shape consistent with the module (single padded block + mask).
    pred = jax.random.normal(k1, (16, num_classes), dtype=jnp.float32)
    labels = jax.random.randint(k2, (16,), 0, num_classes, dtype=jnp.int32)
    out = jax.block_until_ready(gce_loss(pred, labels, q=0.7))
    ref = gce_loss_ref(pred, labels, q=0.7)
    assert jnp.allclose(out, ref, atol=1e-5, rtol=1e-5), (out, ref)

    # 2) Multi-block grid with a partial (masked) last block.
    pred2 = jax.random.normal(k3, (300, num_classes), dtype=jnp.float32)
    labels2 = jax.random.randint(k4, (300,), 0, num_classes, dtype=jnp.int32)
    out2 = jax.block_until_ready(gce_loss(pred2, labels2, q=0.7, tile_n=128))
    ref2 = gce_loss_ref(pred2, labels2, q=0.7)
    assert jnp.allclose(out2, ref2, atol=1e-5, rtol=1e-5), (out2, ref2)

    # 3) Native bf16 streaming (no wrapper cast) + the >=2-block cap (2 x 512).
    pred3 = jax.random.normal(k5, (1024, num_classes),
                              dtype=jnp.float32).astype(jnp.bfloat16)
    labels3 = jax.random.randint(k6, (1024,), 0, num_classes, dtype=jnp.int32)
    out3 = jax.block_until_ready(gce_loss(pred3, labels3, q=0.7))
    ref3 = gce_loss_ref(pred3, labels3, q=0.7)
    assert jnp.allclose(out3, ref3, atol=1e-5, rtol=1e-5), (out3, ref3)

    print("KERNEL_OK")
</pallas_src>

<mosaic_0001>
module attributes {stable_mosaic.version = 11 : i64} {
  func.func @_gce_kernel(%arg0: i32, %arg1: memref<128x128xf32, #tpu.memory_space<vmem>>, %arg2: memref<1x128xi32, #tpu.memory_space<vmem>>, %arg3: memref<1x128xf32, #tpu.memory_space<vmem>>) attributes {dimension_semantics = [#tpu.dimension_semantics<parallel>], iteration_bounds = array<i64: 1>, scalar_prefetch = 0 : i64, scratch_operands = 0 : i64, tpu.core_type = #tpu.core_type<tc>, window_params = [{transform_indices = @transform_0, window_bounds = array<i64: 128, 128>}, {transform_indices = @transform_1, window_bounds = array<i64: 1, 128>}, {transform_indices = @transform_2, window_bounds = array<i64: 1, 128>}]} {
    %c0 = arith.constant 0 : index
    %c0_0 = arith.constant 0 : index
    %0 = vector.load %arg1[%c0, %c0_0] : memref<128x128xf32, #tpu.memory_space<vmem>>, vector<128x128xf32>
    %1 = tpu.transpose %0, [1, 0] : vector<128x128xf32> -> vector<128x128xf32>
    %2 = vector.extract_strided_slice %1 {offsets = [0, 0], sizes = [10, 128], strides = [1, 1]} : vector<128x128xf32> to vector<10x128xf32>
    %c0_1 = arith.constant 0 : index
    %c0_2 = arith.constant 0 : index
    %3 = vector.load %arg2[%c0_1, %c0_2] : memref<1x128xi32, #tpu.memory_space<vmem>>, vector<1x128xi32>
    %cst = arith.constant dense<0xFF800000> : vector<128xf32>
    %4 = vector.multi_reduction <maximumf>, %2, %cst [0] : vector<10x128xf32> to vector<128xf32>
    %5 = vector.shape_cast %4 : vector<128xf32> to vector<1x128xf32>
    %6 = vector.broadcast %5 : vector<1x128xf32> to vector<10x128xf32>
    %7 = arith.subf %2, %6 : vector<10x128xf32>
    %8 = math.exp %7 : vector<10x128xf32>
    %cst_3 = arith.constant dense<0.000000e+00> : vector<128xf32>
    %9 = vector.multi_reduction <add>, %8, %cst_3 [0] : vector<10x128xf32> to vector<128xf32>
    %10 = vector.shape_cast %9 : vector<128xf32> to vector<1x128xf32>
    %11 = tpu.iota {dimensions = array<i32: 0>} : vector<10x128xi32>
    %12 = vector.broadcast %3 : vector<1x128xi32> to vector<10x128xi32>
    %13 = arith.cmpi eq, %11, %12 : vector<10x128xi32>
    %cst_4 = arith.constant 0.000000e+00 : f32
    %14 = vector.broadcast %cst_4 : f32 to vector<10x128xf32>
    %15 = arith.select %13, %2, %14 : vector<10x128xi1>, vector<10x128xf32>
    %cst_5 = arith.constant dense<0.000000e+00> : vector<128xf32>
    %16 = vector.multi_reduction <add>, %15, %cst_5 [0] : vector<10x128xf32> to vector<128xf32>
    %17 = vector.shape_cast %16 : vector<128xf32> to vector<1x128xf32>
    %18 = arith.subf %17, %5 : vector<1x128xf32>
    %19 = math.log %10 : vector<1x128xf32>
    %20 = arith.subf %18, %19 : vector<1x128xf32>
    %cst_6 = arith.constant -16.1180954 : f32
    %cst_7 = arith.constant 0.000000e+00 : f32
    %21 = vector.broadcast %cst_6 : f32 to vector<1x128xf32>
    %22 = arith.maximumf %21, %20 : vector<1x128xf32>
    %23 = vector.broadcast %cst_7 : f32 to vector<1x128xf32>
    %24 = arith.minimumf %23, %22 : vector<1x128xf32>
    %cst_8 = arith.constant 0.699999988 : f32
    %25 = vector.broadcast %cst_8 : f32 to vector<1x128xf32>
    %26 = arith.mulf %25, %24 : vector<1x128xf32>
    %27 = math.exp %26 : vector<1x128xf32>
    %cst_9 = arith.constant 1.000000e+00 : f32
    %28 = vector.broadcast %cst_9 : f32 to vector<1x128xf32>
    %29 = arith.subf %28, %27 : vector<1x128xf32>
    %cst_10 = arith.constant 1.42857146 : f32
    %30 = vector.broadcast %cst_10 : f32 to vector<1x128xf32>
    %31 = arith.mulf %29, %30 : vector<1x128xf32>
    %c0_i32 = arith.constant 0 : i32
    %32 = arith.cmpi slt, %arg0, %c0_i32 : i32
    %33 = arith.extui %32 : i1 to i32
    %c0_i32_11 = arith.constant 0 : i32
    %34 = arith.cmpi ne, %33, %c0_i32_11 : i32
    scf.if %34 {
      %c0_14 = arith.constant 0 : index
      %c0_15 = arith.constant 0 : index
      %38 = vector.load %arg3[%c0_14, %c0_15] : memref<1x128xf32, #tpu.memory_space<vmem>>, vector<1x128xf32>
      tpu.vector_store %arg3[%c0_14, %c0_15], %31 {strides = array<i32>} : memref<1x128xf32, #tpu.memory_space<vmem>>, vector<1x128xf32>,
    } else {
    }
    %c0_i32_12 = arith.constant 0 : i32
    %35 = arith.cmpi eq, %arg0, %c0_i32_12 : i32
    %36 = arith.extui %35 : i1 to i32
    %c0_i32_13 = arith.constant 0 : i32
    %37 = arith.cmpi ne, %36, %c0_i32_13 : i32
    scf.if %37 {
      %c128_i32 = arith.constant 128 : i32
      %38 = arith.muli %arg0, %c128_i32 : i32
      %39 = tpu.iota {dimensions = array<i32: 1>} : vector<1x128xi32>
      %40 = vector.broadcast %38 : i32 to vector<1x128xi32>
      %41 = arith.addi %40, %39 : vector<1x128xi32>
      %c16_i32 = arith.constant 16 : i32
      %42 = vector.broadcast %c16_i32 : i32 to vector<1x128xi32>
      %43 = arith.cmpi slt, %41, %42 : vector<1x128xi32>
      %cst_14 = arith.constant 0.000000e+00 : f32
      %44 = vector.broadcast %cst_14 : f32 to vector<1x128xf32>
      %45 = arith.select %43, %31, %44 : vector<1x128xi1>, vector<1x128xf32>
      %c0_15 = arith.constant 0 : index
      %c0_16 = arith.constant 0 : index
      %46 = vector.load %arg3[%c0_15, %c0_16] : memref<1x128xf32, #tpu.memory_space<vmem>>, vector<1x128xf32>
      tpu.vector_store %arg3[%c0_15, %c0_16], %45 {strides = array<i32>} : memref<1x128xf32, #tpu.memory_space<vmem>>, vector<1x128xf32>,
    } else {
    }
    return
  }
  func.func @transform_0(%arg0: i32) -> (i32, i32) {
    %c0_i32 = arith.constant 0 : i32
    %c0_i32_0 = arith.constant 0 : i32
    return %arg0, %c0_i32 : i32, i32
  }
  func.func @transform_1(%arg0: i32) -> (i32, i32) {
    %c0_i32 = arith.constant 0 : i32
    %c0_i32_0 = arith.constant 0 : i32
    return %c0_i32, %arg0 : i32, i32
  }
  func.func @transform_2(%arg0: i32) -> (i32, i32) {
    %c0_i32 = arith.constant 0 : i32
    %c0_i32_0 = arith.constant 0 : i32
    return %c0_i32, %arg0 : i32, i32
  }
}

</mosaic_0001>

<llo_original>
// kernel: tpu_custom_call.1
$region0: #{tpu_custom_call.1}
  #allocation0 [shape = 'u32[]', space=smem, size = 0x4, offset = 0x4, fixed_abs, tag = 'smem constant byte address 0x4 - core index']
  #allocation1 [shape = 'u32[144,128]{1,0:T(1,128)}', space=vmem, size = 0x12000, scoped, tag = 'internal scratch']
  %s0 = inlined_call_operand.hbm [shape: f32[16,10], index: 0, kind: input, shape index: {}]
  %s1 = inlined_call_operand.vmem [shape: s32[1,16], index: 1, kind: input, shape index: {}]
  %s2 = inlined_call_operand.hbm [shape: f32[1,128], index: 2, kind: output, shape index: {}]
  %s3 = sld [smem:[#allocation0]]
  $region30: #{tpu_custom_call.1} parent=0
    _
  %s5 = ssub.s32 1, %s3
  %s6 = scalar_select 0, %s5, %s3
  $region1: #{tpu_custom_call.1} parent=0
    #allocation2 [shape = 'u8[65536]{0}', space=vmem, size = 0x10000, scoped, tag = 'input window, operand 0, single buffered']
    #allocation3 [shape = 's32[1]{0}', space=sflag, size = 0x4, scoped, tag = 'scoped memory for tpu_custom_call.1']
    #allocation4 [shape = 's32[1]{0}', space=sflag, size = 0x4, scoped, tag = 'scoped memory for tpu_custom_call.1']
    #allocation5 [shape = 'u8[512]{0}', space=vmem, size = 0x400, scoped, tag = 'output window, operand 0, single buffered']
    %7 = vsyncpa [#allocation3], 0
    %8 = vsyncpa [#allocation4], 0
    // Predicated region
    $region2: #{tpu_custom_call.1} parent=1 // pred_check
      _
    $region3: #{tpu_custom_call.1} parent=1 // pred_check_branch
      %10 = sbr.rel (0) target = $region5
    $region4: #{tpu_custom_call.1} parent=1 // pred_region
      %s12 = ssub.s32 2048, 256
      %13 = vsyncadd [#allocation3], %s12
      %s14 = sshll.u32 [#allocation2], 4
      %s15 = int_to_ptr.vmem [resolvable:$true] %s14
      %20 = dma.hbm_to_vmem [thread:$0]  %s0, 256, %s15, [#allocation3], 128, 128, 8
    $region5: #{tpu_custom_call.1} parent=1 // pred_fallthru
      _
    // Predicated region
    $region6: #{tpu_custom_call.1} parent=1 // pred_check
      _
    $region7: #{tpu_custom_call.1} parent=1 // pred_check_branch
      %22 = sbr.rel (0) target = $region9
    $region8: #{tpu_custom_call.1} parent=1 // pred_region
      _
    $region9: #{tpu_custom_call.1} parent=1 // pred_fallthru
      _
    // Predicated region
    $region10: #{tpu_custom_call.1} parent=1 // pred_check
      _
    $region11: #{tpu_custom_call.1} parent=1 // pred_check_branch
      %24 = sbr.rel (0) target = $region13
    $region12: #{tpu_custom_call.1} parent=1 // pred_region
      %25 = dma.done [#allocation3], 2048
    $region13: #{tpu_custom_call.1} parent=1 // pred_fallthru
      _
    %v26 = vld [vmem:[#allocation2] sm:$0xff]
    %v27 = vld [vmem:[#allocation2 + $0x8] sm:$0xff]
    %v28 = vld [vmem:[#allocation2 + $0x10] sm:$0xff]
    %v29 = vld [vmem:[#allocation2 + $0x18] sm:$0xff]
    %v30 = vld [vmem:[#allocation2 + $0x20] sm:$0xff]
    %v31 = vld [vmem:[#allocation2 + $0x28] sm:$0xff]
    %v32 = vld [vmem:[#allocation2 + $0x30] sm:$0xff]
    %v33 = vld [vmem:[#allocation2 + $0x38] sm:$0xff]
    %v34 = vld [vmem:[#allocation2 + $0x40] sm:$0xff]
    %v35 = vld [vmem:[#allocation2 + $0x48] sm:$0xff]
    %v36 = vld [vmem:[#allocation2 + $0x50] sm:$0xff]
    %v37 = vld [vmem:[#allocation2 + $0x58] sm:$0xff]
    %v38 = vld [vmem:[#allocation2 + $0x60] sm:$0xff]
    %v39 = vld [vmem:[#allocation2 + $0x68] sm:$0xff]
    %v40 = vld [vmem:[#allocation2 + $0x70] sm:$0xff]
    %v41 = vld [vmem:[#allocation2 + $0x78] sm:$0xff]
    %42 = vxpose.xlu0.b32.start [1/16] %v26, 128
    %43 = vxpose.xlu0.b32.cont [2/16] %v27, 128
    %44 = vxpose.xlu0.b32.cont [3/16] %v28, 128
    %45 = vxpose.xlu0.b32.cont [4/16] %v29, 128
    %46 = vxpose.xlu0.b32.cont [5/16] %v30, 128
    %47 = vxpose.xlu0.b32.cont [6/16] %v31, 128
    %48 = vxpose.xlu0.b32.cont [7/16] %v32, 128
    %49 = vxpose.xlu0.b32.cont [8/16] %v33, 128
    %50 = vxpose.xlu0.b32.cont [9/16] %v34, 128
    %51 = vxpose.xlu0.b32.cont [10/16] %v35, 128
    %52 = vxpose.xlu0.b32.cont [11/16] %v36, 128
    %53 = vxpose.xlu0.b32.cont [12/16] %v37, 128
    %54 = vxpose.xlu0.b32.cont [13/16] %v38, 128
    %55 = vxpose.xlu0.b32.cont [14/16] %v39, 128
    %56 = vxpose.xlu0.b32.cont [15/16] %v40, 128
    %57 = vxpose.xlu0.b32.end [16/16] %v41, 128
    %v58 = vpop.trf.xlu0
    %v59 = vpop.trf.xlu0
    %v60 = vpop.trf.xlu0
    %v61 = vpop.trf.xlu0
    %v62 = vpop.trf.xlu0
    %v63 = vpop.trf.xlu0
    %v64 = vpop.trf.xlu0
    %v65 = vpop.trf.xlu0
    %v66 = vpop.trf.xlu0
    %v67 = vpop.trf.xlu0
    %v68 = vpop.trf.xlu0
    %v69 = vpop.trf.xlu0
    %v70 = vpop.trf.xlu0
    %v71 = vpop.trf.xlu0
    %v72 = vpop.trf.xlu0
    %v73 = vpop.trf.xlu0
    %v74 = vld [vmem:[%s1] sm:$0x1]
    %vm75 = vcmask 1041408
    %v76 = vsel %vm75, %v59, -inf
    %v77 = vmax.f32 %v58, %v76
    %v78 = vrot.slane %v77, 4
    %v79 = vmax.f32 %v77, %v78
    %v80 = vrot.slane %v79, 2
    %v81 = vmax.f32 %v79, %v80
    %v82 = vrot.slane %v81, 1
    %v83 = vmax.f32 %v81, %v82
    %v84 = vsub.f32 %v58, %v83
    %v85 = vsub.f32 %v59, %v83
    %v86 = vmul.f32 %v84, 1.442695
    %v87 = vpow.pop %v86
    %v88 = vmul.f32 %v85, 1.442695
    %v89 = vpow.pop %v88
    %v90 = vsel %vm75, %v89, 0.0
    %v91 = vadd.f32 %v87, %v90
    %v92 = vrot.slane %v91, 4
    %v93 = vadd.f32 %v91, %v92
    %v94 = vrot.slane %v93, 2
    %v95 = vadd.f32 %v93, %v94
    %v96 = vrot.slane %v95, 1
    %v97 = vadd.f32 %v95, %v96
    %v98 = vlaneseq
    %v99 = vshrl.u32 %v98, 7
    %v100 = vadd.s32 %v99, 8
    %v101 = vlaneseq
    %v102 = vshrl.u32 %v101, 7
    %v103 = vsub.s32 0, %v102
    %v104 = vrot.slane %v74, %v103
    %vm105 = vcmp.eq.s32.totalorder %v99, %v104
    %vm106 = vcmp.eq.s32.totalorder %v100, %v104
    %v107 = vsel %vm105, %v58, 0.0
    %v108 = vsel %vm106, %v59, 0.0
    %v109 = vsel %vm75, %v108, 0.0
    %v110 = vadd.f32 %v107, %v109
    %v111 = vrot.slane %v110, 4
    %v112 = vadd.f32 %v110, %v111
    %v113 = vrot.slane %v112, 2
    %v114 = vadd.f32 %v112, %v113
    %v115 = vrot.slane %v114, 1
    %v116 = vadd.f32 %v114, %v115
    %v117 = vsub.f32 %v116, %v83
    %v118 = vlog2.pop %v97
    %v119 = vmul.f32 %v118, 0.6931472
    %v120 = vsub.f32 %v117, %v119
    %v121 = vmax.f32 %v120, -16.118095
    %v122 = vmin.f32 %v121, 0.0
    %v123 = vmul.f32 %v122, 0.7
    %v124 = vmul.f32 %v123, 1.442695
    %v125 = vpow.pop %v124
    %v126 = vsub.f32 1.0, %v125
    %v127 = vmul.f32 %v126, 1.4285715
    %p128 = scmp.lt.s32.totalorder 0, 0
    // Predicated region
    $region14: #{tpu_custom_call.1} parent=1 // pred_check
      %p129 = pneg %p128
    $region15: #{tpu_custom_call.1} parent=1 // pred_check_branch
      %131 = sbr.rel (%p129) target = $region17
    $region16: #{tpu_custom_call.1} parent=1 // pred_region
      %132 = vst [vmem:[#allocation5] sm:$0x1] %v127
    $region17: #{tpu_custom_call.1} parent=1 // pred_fallthru
      _
    %p133 = scmp.eq.s32.totalorder 0, 0
    // Predicated region
    $region18: #{tpu_custom_call.1} parent=1 // pred_check
      %p134 = pneg %p133
    $region19: #{tpu_custom_call.1} parent=1 // pred_check_branch
      %136 = sbr.rel (%p134) target = $region21
    $region20: #{tpu_custom_call.1} parent=1 // pred_region
      %s137 = smul.u32 0, 128
      %v138 = vlaneseq
      %v139 = vand.u32 %v138, 127
      %v140 = vstv %s137
      %v141 = vadd.s32 %v140, %v139
      %vm142 = vcmp.lt.s32.totalorder %v141, 16
      %v143 = vsel %vm142, %v127, 0.0
      %144 = vst [vmem:[#allocation5] sm:$0x1] %v143
    $region21: #{tpu_custom_call.1} parent=1 // pred_fallthru
      _
    // Predicated region
    $region22: #{tpu_custom_call.1} parent=1 // pred_check
      _
    $region23: #{tpu_custom_call.1} parent=1 // pred_check_branch
      %146 = sbr.rel (0) target = $region25
    $region24: #{tpu_custom_call.1} parent=1 // pred_region
      %s148 = ssub.s32 16, 16
      %149 = vsyncadd [#allocation4], %s148
      %s151 = sshll.u32 [#allocation5], 4
      %s152 = int_to_ptr.vmem [resolvable:$true] %s151
      %154 = dma.vmem_to_hbm [thread:$0]  %s152, 16, %s2, [#allocation4]
    $region25: #{tpu_custom_call.1} parent=1 // pred_fallthru
      _
    // Predicated region
    $region26: #{tpu_custom_call.1} parent=1 // pred_check
      _
    $region27: #{tpu_custom_call.1} parent=1 // pred_check_branch
      %156 = sbr.rel (0) target = $region29
    $region28: #{tpu_custom_call.1} parent=1 // pred_region
      %157 = dma.done [#allocation4], 16
    $region29: #{tpu_custom_call.1} parent=1 // pred_fallthru
      _
    %158 = vsyncpa [#allocation3], 1
    %159 = vsyncpa [#allocation4], 1

</llo_original>
